<compile_context>
chip_gen: v6e
topology: v6e:2x2x1
jax: 0.10.0
libtpu: 0.0.40
codegen_flags: <defaults>
</compile_context>

<pallas_src>
import jax
import jax.numpy as jnp
import numpy as np
from jax.experimental import pallas as pl
from jax.experimental.pallas import tpu as pltpu

# --- static problem sizes (small, consistent with the module) ---
G = 2        # number of graphs in the sequence
N = 8        # nodes per graph
F_IN = 2     # GCN input feature dim
F_OUT = 2    # GCN output feature dim == RNN input dim
H = 3        # RNN hidden dim
T = G * N    # RNN sequence length after torch.cat


def fused_kernel(a_blk_ref, x_all_ref, w_comb_ref, bias_comb_ref,
                 w_hh_t_ref, w_lin_ref, b_lin_ref, out_ref):
    # ---- folded GCN + RNN-input projection: pre_all = A_blk @ (X @ W_comb) + bias ----
    xw = jnp.dot(x_all_ref[...], w_comb_ref[...],
                 preferred_element_type=jnp.float32)                   # (T, H)
    pre_all = jnp.dot(a_blk_ref[...], xw,
                      preferred_element_type=jnp.float32) + bias_comb_ref[...]  # (T, H)

    # ---- hoist W_hh^T rows once (kept out of the recurrence) ----
    w_hh_t = w_hh_t_ref[...]                                           # (H, H)
    w_rows = [w_hh_t[j:j + 1, :] for j in range(H)]                    # H x (1, H)

    # ---- fully-unrolled tanh recurrence on VPU/EUP, h0 = 0 ----
    h = jnp.zeros((1, H), jnp.float32)
    for t in range(T):                                                  # static unroll, T=16
        hW = w_rows[0] * h[:, 0:1]
        for j in range(1, H):
            hW = hW + w_rows[j] * h[:, j:j + 1]
        h = jnp.tanh(pre_all[t:t + 1, :] + hW)

    # ---- ReLU -> Linear(3,1) (lane mul + reduce) -> Sigmoid ----
    h = jnp.maximum(h, 0.0)
    y = jnp.sum(h * w_lin_ref[...], axis=-1, keepdims=True) + b_lin_ref[...]
    out_ref[...] = jax.nn.sigmoid(y)


def graph_sequence_forward(a_norm, x, params):
    (w_gcn, b_gcn, w_ih, w_hh, b_ih, b_hh, w_lin, b_lin) = params

    # Exact linear folds done in the wrapper (constant-folded by XLA):
    w_ih_t = w_ih.T.astype(jnp.float32)                                # (F_OUT, H)
    w_comb = (w_gcn.astype(jnp.float32) @ w_ih_t)                      # (F_IN, H)
    bias_comb = (b_gcn.astype(jnp.float32) @ w_ih_t
                 + b_ih.astype(jnp.float32)
                 + b_hh.astype(jnp.float32)).reshape(1, H)             # (1, H)

    # Block-diagonal normalized adjacency so both graphs propagate in one matmul.
    a_blk = jnp.zeros((T, T), jnp.float32)
    for g in range(G):
        a_blk = a_blk.at[g * N:(g + 1) * N, g * N:(g + 1) * N].set(
            a_norm[g].astype(jnp.float32))

    x_all = x.reshape(T, F_IN).astype(jnp.float32)                     # (T, F_IN)

    args = (
        a_blk,                                                         # (T, T)
        x_all,                                                         # (T, F_IN)
        w_comb,                                                        # (F_IN, H)
        bias_comb,                                                     # (1, H)
        w_hh.T.astype(jnp.float32),                                    # (H, H)
        w_lin.reshape(1, H).astype(jnp.float32),                       # (1, H)
        b_lin.reshape(1, 1).astype(jnp.float32),                       # (1, 1)
    )
    return pl.pallas_call(
        fused_kernel,
        out_shape=jax.ShapeDtypeStruct((1, 1), jnp.float32),
        in_specs=[pl.BlockSpec(memory_space=pltpu.MemorySpace.VMEM)] * len(args),
        out_specs=pl.BlockSpec(memory_space=pltpu.MemorySpace.VMEM),
    )(*args)


# ---------------- glue: GCN normalization (symmetric, with self-loops) ----------------
def build_norm_adj(edge_index, num_nodes):
    src, dst = edge_index
    A = jnp.zeros((num_nodes, num_nodes), jnp.float32).at[dst, src].set(1.0)
    A = A + jnp.eye(num_nodes, dtype=jnp.float32)          # add self-loops
    deg = A.sum(axis=1)
    dinv = 1.0 / jnp.sqrt(deg)
    return dinv[:, None] * A * dinv[None, :]                # D^{-1/2} (A+I) D^{-1/2}


# ---------------- pure-JAX reference of the PyTorch forward (unfused) ----------------
def reference_forward(a_norm, x, params):
    (w_gcn, b_gcn, w_ih, w_hh, b_ih, b_hh, w_lin, b_lin) = params
    seq = []
    for g in range(G):
        seq.append(a_norm[g] @ (x[g] @ w_gcn) + b_gcn)
    seq = jnp.concatenate(seq, axis=0)                       # (T, F_OUT)
    h = jnp.zeros((H,), jnp.float32)
    for t in range(T):
        h = jnp.tanh(w_ih @ seq[t] + b_ih + w_hh @ h + b_hh)
    h = jnp.maximum(h, 0.0)
    y = w_lin @ h + b_lin
    return jax.nn.sigmoid(y).reshape(1, 1)


if __name__ == "__main__":
    key = jax.random.PRNGKey(0)
    ks = jax.random.split(key, 10)

    # deterministic parameters (shapes follow the PyTorch module)
    w_gcn = jax.random.normal(ks[0], (F_IN, F_OUT), jnp.float32) * 0.5
    b_gcn = jax.random.normal(ks[1], (F_OUT,), jnp.float32) * 0.1
    w_ih = jax.random.normal(ks[2], (H, F_OUT), jnp.float32) * 0.5   # RNN weight_ih_l0
    w_hh = jax.random.normal(ks[3], (H, H), jnp.float32) * 0.5       # RNN weight_hh_l0
    b_ih = jax.random.normal(ks[4], (H,), jnp.float32) * 0.1
    b_hh = jax.random.normal(ks[5], (H,), jnp.float32) * 0.1
    w_lin = jax.random.normal(ks[6], (1, H), jnp.float32) * 0.5
    b_lin = jax.random.normal(ks[7], (1,), jnp.float32) * 0.1
    params = (w_gcn, b_gcn, w_ih, w_hh, b_ih, b_hh, w_lin, b_lin)

    # deterministic node features for G graphs of N nodes each
    x = jax.random.normal(ks[8], (G, N, F_IN), jnp.float32)

    # deterministic graph structure: graph 0 = undirected ring, graph 1 = ring + chords
    ring_src = np.arange(N)
    ring_dst = (ring_src + 1) % N
    ei0 = np.stack([np.concatenate([ring_src, ring_dst]),
                    np.concatenate([ring_dst, ring_src])])
    chord_src = np.arange(N)
    chord_dst = (chord_src + 3) % N
    ei1 = np.stack([np.concatenate([ring_src, ring_dst, chord_src, chord_dst]),
                    np.concatenate([ring_dst, ring_src, chord_dst, chord_src])])
    a_norm = jnp.stack([build_norm_adj(jnp.asarray(ei0), N),
                        build_norm_adj(jnp.asarray(ei1), N)])          # (G, N, N)

    out = graph_sequence_forward(a_norm, x, params)
    out = jax.block_until_ready(out)

    ref = reference_forward(a_norm, x, params)
    assert out.shape == (1, 1)
    assert jnp.allclose(out, ref, rtol=1e-4, atol=1e-5), (out, ref)

    print("KERNEL_OK")
</pallas_src>

<mosaic_0001>
module attributes {stable_mosaic.version = 11 : i64} {
  func.func @fused_kernel(%arg0: memref<16x16xf32, #tpu.memory_space<vmem>>, %arg1: memref<16x2xf32, #tpu.memory_space<vmem>>, %arg2: memref<2x3xf32, #tpu.memory_space<vmem>>, %arg3: memref<1x3xf32, #tpu.memory_space<vmem>>, %arg4: memref<3x3xf32, #tpu.memory_space<vmem>>, %arg5: memref<1x3xf32, #tpu.memory_space<vmem>>, %arg6: memref<1x1xf32, #tpu.memory_space<vmem>>, %arg7: memref<1x1xf32, #tpu.memory_space<vmem>>) attributes {dimension_semantics = [], scalar_prefetch = 0 : i64, scratch_operands = 0 : i64, tpu.core_type = #tpu.core_type<tc>} {
    %c0 = arith.constant 0 : index
    %c0_0 = arith.constant 0 : index
    %0 = vector.load %arg1[%c0, %c0_0] : memref<16x2xf32, #tpu.memory_space<vmem>>, vector<16x2xf32>
    %c0_1 = arith.constant 0 : index
    %c0_2 = arith.constant 0 : index
    %1 = vector.load %arg2[%c0_1, %c0_2] : memref<2x3xf32, #tpu.memory_space<vmem>>, vector<2x3xf32>
    %cst = arith.constant dense<0.000000e+00> : vector<16x3xf32>
    %2 = tpu.matmul %0, %1, %cst {dimension_numbers = #tpu.dot_dimension_numbers<[1], [0], [0], [1], [0, 0, 1, 1], [], []>} : vector<16x2xf32>, vector<2x3xf32>, vector<16x3xf32> -> vector<16x3xf32>
    %c0_3 = arith.constant 0 : index
    %c0_4 = arith.constant 0 : index
    %3 = vector.load %arg0[%c0_3, %c0_4] : memref<16x16xf32, #tpu.memory_space<vmem>>, vector<16x16xf32>
    %cst_5 = arith.constant dense<0.000000e+00> : vector<16x3xf32>
    %4 = tpu.matmul %3, %2, %cst_5 {dimension_numbers = #tpu.dot_dimension_numbers<[1], [0], [0], [1], [0, 0, 1, 1], [], []>} : vector<16x16xf32>, vector<16x3xf32>, vector<16x3xf32> -> vector<16x3xf32>
    %c0_6 = arith.constant 0 : index
    %c0_7 = arith.constant 0 : index
    %5 = vector.load %arg3[%c0_6, %c0_7] : memref<1x3xf32, #tpu.memory_space<vmem>>, vector<1x3xf32>
    %6 = vector.broadcast %5 : vector<1x3xf32> to vector<16x3xf32>
    %7 = arith.addf %4, %6 : vector<16x3xf32>
    %c0_8 = arith.constant 0 : index
    %c0_9 = arith.constant 0 : index
    %8 = vector.load %arg4[%c0_8, %c0_9] : memref<3x3xf32, #tpu.memory_space<vmem>>, vector<3x3xf32>
    %9 = vector.extract_strided_slice %8 {offsets = [0, 0], sizes = [1, 3], strides = [1, 1]} : vector<3x3xf32> to vector<1x3xf32>
    %10 = vector.extract_strided_slice %8 {offsets = [1, 0], sizes = [1, 3], strides = [1, 1]} : vector<3x3xf32> to vector<1x3xf32>
    %11 = vector.extract_strided_slice %8 {offsets = [2, 0], sizes = [1, 3], strides = [1, 1]} : vector<3x3xf32> to vector<1x3xf32>
    %cst_10 = arith.constant 0.000000e+00 : f32
    %12 = vector.broadcast %cst_10 : f32 to vector<1x3xf32>
    %13 = vector.extract_strided_slice %12 {offsets = [0, 0], sizes = [1, 1], strides = [1, 1]} : vector<1x3xf32> to vector<1x1xf32>
    %14 = vector.broadcast %13 : vector<1x1xf32> to vector<1x3xf32>
    %15 = arith.mulf %9, %14 : vector<1x3xf32>
    %16 = vector.extract_strided_slice %12 {offsets = [0, 1], sizes = [1, 1], strides = [1, 1]} : vector<1x3xf32> to vector<1x1xf32>
    %17 = vector.broadcast %16 : vector<1x1xf32> to vector<1x3xf32>
    %18 = arith.mulf %10, %17 : vector<1x3xf32>
    %19 = arith.addf %15, %18 : vector<1x3xf32>
    %20 = vector.extract_strided_slice %12 {offsets = [0, 2], sizes = [1, 1], strides = [1, 1]} : vector<1x3xf32> to vector<1x1xf32>
    %21 = vector.broadcast %20 : vector<1x1xf32> to vector<1x3xf32>
    %22 = arith.mulf %11, %21 : vector<1x3xf32>
    %23 = arith.addf %19, %22 : vector<1x3xf32>
    %24 = vector.extract_strided_slice %7 {offsets = [0, 0], sizes = [1, 3], strides = [1, 1]} : vector<16x3xf32> to vector<1x3xf32>
    %25 = arith.addf %24, %23 : vector<1x3xf32>
    %26 = math.tanh %25 : vector<1x3xf32>
    %27 = vector.extract_strided_slice %26 {offsets = [0, 0], sizes = [1, 1], strides = [1, 1]} : vector<1x3xf32> to vector<1x1xf32>
    %28 = vector.broadcast %27 : vector<1x1xf32> to vector<1x3xf32>
    %29 = arith.mulf %9, %28 : vector<1x3xf32>
    %30 = vector.extract_strided_slice %26 {offsets = [0, 1], sizes = [1, 1], strides = [1, 1]} : vector<1x3xf32> to vector<1x1xf32>
    %31 = vector.broadcast %30 : vector<1x1xf32> to vector<1x3xf32>
    %32 = arith.mulf %10, %31 : vector<1x3xf32>
    %33 = arith.addf %29, %32 : vector<1x3xf32>
    %34 = vector.extract_strided_slice %26 {offsets = [0, 2], sizes = [1, 1], strides = [1, 1]} : vector<1x3xf32> to vector<1x1xf32>
    %35 = vector.broadcast %34 : vector<1x1xf32> to vector<1x3xf32>
    %36 = arith.mulf %11, %35 : vector<1x3xf32>
    %37 = arith.addf %33, %36 : vector<1x3xf32>
    %38 = vector.extract_strided_slice %7 {offsets = [1, 0], sizes = [1, 3], strides = [1, 1]} : vector<16x3xf32> to vector<1x3xf32>
    %39 = arith.addf %38, %37 : vector<1x3xf32>
    %40 = math.tanh %39 : vector<1x3xf32>
    %41 = vector.extract_strided_slice %40 {offsets = [0, 0], sizes = [1, 1], strides = [1, 1]} : vector<1x3xf32> to vector<1x1xf32>
    %42 = vector.broadcast %41 : vector<1x1xf32> to vector<1x3xf32>
    %43 = arith.mulf %9, %42 : vector<1x3xf32>
    %44 = vector.extract_strided_slice %40 {offsets = [0, 1], sizes = [1, 1], strides = [1, 1]} : vector<1x3xf32> to vector<1x1xf32>
    %45 = vector.broadcast %44 : vector<1x1xf32> to vector<1x3xf32>
    %46 = arith.mulf %10, %45 : vector<1x3xf32>
    %47 = arith.addf %43, %46 : vector<1x3xf32>
    %48 = vector.extract_strided_slice %40 {offsets = [0, 2], sizes = [1, 1], strides = [1, 1]} : vector<1x3xf32> to vector<1x1xf32>
    %49 = vector.broadcast %48 : vector<1x1xf32> to vector<1x3xf32>
    %50 = arith.mulf %11, %49 : vector<1x3xf32>
    %51 = arith.addf %47, %50 : vector<1x3xf32>
    %52 = vector.extract_strided_slice %7 {offsets = [2, 0], sizes = [1, 3], strides = [1, 1]} : vector<16x3xf32> to vector<1x3xf32>
    %53 = arith.addf %52, %51 : vector<1x3xf32>
    %54 = math.tanh %53 : vector<1x3xf32>
    %55 = vector.extract_strided_slice %54 {offsets = [0, 0], sizes = [1, 1], strides = [1, 1]} : vector<1x3xf32> to vector<1x1xf32>
    %56 = vector.broadcast %55 : vector<1x1xf32> to vector<1x3xf32>
    %57 = arith.mulf %9, %56 : vector<1x3xf32>
    %58 = vector.extract_strided_slice %54 {offsets = [0, 1], sizes = [1, 1], strides = [1, 1]} : vector<1x3xf32> to vector<1x1xf32>
    %59 = vector.broadcast %58 : vector<1x1xf32> to vector<1x3xf32>
    %60 = arith.mulf %10, %59 : vector<1x3xf32>
    %61 = arith.addf %57, %60 : vector<1x3xf32>
    %62 = vector.extract_strided_slice %54 {offsets = [0, 2], sizes = [1, 1], strides = [1, 1]} : vector<1x3xf32> to vector<1x1xf32>
    %63 = vector.broadcast %62 : vector<1x1xf32> to vector<1x3xf32>
    %64 = arith.mulf %11, %63 : vector<1x3xf32>
    %65 = arith.addf %61, %64 : vector<1x3xf32>
    %66 = vector.extract_strided_slice %7 {offsets = [3, 0], sizes = [1, 3], strides = [1, 1]} : vector<16x3xf32> to vector<1x3xf32>
    %67 = arith.addf %66, %65 : vector<1x3xf32>
    %68 = math.tanh %67 : vector<1x3xf32>
    %69 = vector.extract_strided_slice %68 {offsets = [0, 0], sizes = [1, 1], strides = [1, 1]} : vector<1x3xf32> to vector<1x1xf32>
    %70 = vector.broadcast %69 : vector<1x1xf32> to vector<1x3xf32>
    %71 = arith.mulf %9, %70 : vector<1x3xf32>
    %72 = vector.extract_strided_slice %68 {offsets = [0, 1], sizes = [1, 1], strides = [1, 1]} : vector<1x3xf32> to vector<1x1xf32>
    %73 = vector.broadcast %72 : vector<1x1xf32> to vector<1x3xf32>
    %74 = arith.mulf %10, %73 : vector<1x3xf32>
    %75 = arith.addf %71, %74 : vector<1x3xf32>
    %76 = vector.extract_strided_slice %68 {offsets = [0, 2], sizes = [1, 1], strides = [1, 1]} : vector<1x3xf32> to vector<1x1xf32>
    %77 = vector.broadcast %76 : vector<1x1xf32> to vector<1x3xf32>
    %78 = arith.mulf %11, %77 : vector<1x3xf32>
    %79 = arith.addf %75, %78 : vector<1x3xf32>
    %80 = vector.extract_strided_slice %7 {offsets = [4, 0], sizes = [1, 3], strides = [1, 1]} : vector<16x3xf32> to vector<1x3xf32>
    %81 = arith.addf %80, %79 : vector<1x3xf32>
    %82 = math.tanh %81 : vector<1x3xf32>
    %83 = vector.extract_strided_slice %82 {offsets = [0, 0], sizes = [1, 1], strides = [1, 1]} : vector<1x3xf32> to vector<1x1xf32>
    %84 = vector.broadcast %83 : vector<1x1xf32> to vector<1x3xf32>
    %85 = arith.mulf %9, %84 : vector<1x3xf32>
    %86 = vector.extract_strided_slice %82 {offsets = [0, 1], sizes = [1, 1], strides = [1, 1]} : vector<1x3xf32> to vector<1x1xf32>
    %87 = vector.broadcast %86 : vector<1x1xf32> to vector<1x3xf32>
    %88 = arith.mulf %10, %87 : vector<1x3xf32>
    %89 = arith.addf %85, %88 : vector<1x3xf32>
    %90 = vector.extract_strided_slice %82 {offsets = [0, 2], sizes = [1, 1], strides = [1, 1]} : vector<1x3xf32> to vector<1x1xf32>
    %91 = vector.broadcast %90 : vector<1x1xf32> to vector<1x3xf32>
    %92 = arith.mulf %11, %91 : vector<1x3xf32>
    %93 = arith.addf %89, %92 : vector<1x3xf32>
    %94 = vector.extract_strided_slice %7 {offsets = [5, 0], sizes = [1, 3], strides = [1, 1]} : vector<16x3xf32> to vector<1x3xf32>
    %95 = arith.addf %94, %93 : vector<1x3xf32>
    %96 = math.tanh %95 : vector<1x3xf32>
    %97 = vector.extract_strided_slice %96 {offsets = [0, 0], sizes = [1, 1], strides = [1, 1]} : vector<1x3xf32> to vector<1x1xf32>
    %98 = vector.broadcast %97 : vector<1x1xf32> to vector<1x3xf32>
    %99 = arith.mulf %9, %98 : vector<1x3xf32>
    %100 = vector.extract_strided_slice %96 {offsets = [0, 1], sizes = [1, 1], strides = [1, 1]} : vector<1x3xf32> to vector<1x1xf32>
    %101 = vector.broadcast %100 : vector<1x1xf32> to vector<1x3xf32>
    %102 = arith.mulf %10, %101 : vector<1x3xf32>
    %103 = arith.addf %99, %102 : vector<1x3xf32>
    %104 = vector.extract_strided_slice %96 {offsets = [0, 2], sizes = [1, 1], strides = [1, 1]} : vector<1x3xf32> to vector<1x1xf32>
    %105 = vector.broadcast %104 : vector<1x1xf32> to vector<1x3xf32>
    %106 = arith.mulf %11, %105 : vector<1x3xf32>
    %107 = arith.addf %103, %106 : vector<1x3xf32>
    %108 = vector.extract_strided_slice %7 {offsets = [6, 0], sizes = [1, 3], strides = [1, 1]} : vector<16x3xf32> to vector<1x3xf32>
    %109 = arith.addf %108, %107 : vector<1x3xf32>
    %110 = math.tanh %109 : vector<1x3xf32>
    %111 = vector.extract_strided_slice %110 {offsets = [0, 0], sizes = [1, 1], strides = [1, 1]} : vector<1x3xf32> to vector<1x1xf32>
    %112 = vector.broadcast %111 : vector<1x1xf32> to vector<1x3xf32>
    %113 = arith.mulf %9, %112 : vector<1x3xf32>
    %114 = vector.extract_strided_slice %110 {offsets = [0, 1], sizes = [1, 1], strides = [1, 1]} : vector<1x3xf32> to vector<1x1xf32>
    %115 = vector.broadcast %114 : vector<1x1xf32> to vector<1x3xf32>
    %116 = arith.mulf %10, %115 : vector<1x3xf32>
    %117 = arith.addf %113, %116 : vector<1x3xf32>
    %118 = vector.extract_strided_slice %110 {offsets = [0, 2], sizes = [1, 1], strides = [1, 1]} : vector<1x3xf32> to vector<1x1xf32>
    %119 = vector.broadcast %118 : vector<1x1xf32> to vector<1x3xf32>
    %120 = arith.mulf %11, %119 : vector<1x3xf32>
    %121 = arith.addf %117, %120 : vector<1x3xf32>
    %122 = vector.extract_strided_slice %7 {offsets = [7, 0], sizes = [1, 3], strides = [1, 1]} : vector<16x3xf32> to vector<1x3xf32>
    %123 = arith.addf %122, %121 : vector<1x3xf32>
    %124 = math.tanh %123 : vector<1x3xf32>
    %125 = vector.extract_strided_slice %124 {offsets = [0, 0], sizes = [1, 1], strides = [1, 1]} : vector<1x3xf32> to vector<1x1xf32>
    %126 = vector.broadcast %125 : vector<1x1xf32> to vector<1x3xf32>
    %127 = arith.mulf %9, %126 : vector<1x3xf32>
    %128 = vector.extract_strided_slice %124 {offsets = [0, 1], sizes = [1, 1], strides = [1, 1]} : vector<1x3xf32> to vector<1x1xf32>
    %129 = vector.broadcast %128 : vector<1x1xf32> to vector<1x3xf32>
    %130 = arith.mulf %10, %129 : vector<1x3xf32>
    %131 = arith.addf %127, %130 : vector<1x3xf32>
    %132 = vector.extract_strided_slice %124 {offsets = [0, 2], sizes = [1, 1], strides = [1, 1]} : vector<1x3xf32> to vector<1x1xf32>
    %133 = vector.broadcast %132 : vector<1x1xf32> to vector<1x3xf32>
    %134 = arith.mulf %11, %133 : vector<1x3xf32>
    %135 = arith.addf %131, %134 : vector<1x3xf32>
    %136 = vector.extract_strided_slice %7 {offsets = [8, 0], sizes = [1, 3], strides = [1, 1]} : vector<16x3xf32> to vector<1x3xf32>
    %137 = arith.addf %136, %135 : vector<1x3xf32>
    %138 = math.tanh %137 : vector<1x3xf32>
    %139 = vector.extract_strided_slice %138 {offsets = [0, 0], sizes = [1, 1], strides = [1, 1]} : vector<1x3xf32> to vector<1x1xf32>
    %140 = vector.broadcast %139 : vector<1x1xf32> to vector<1x3xf32>
    %141 = arith.mulf %9, %140 : vector<1x3xf32>
    %142 = vector.extract_strided_slice %138 {offsets = [0, 1], sizes = [1, 1], strides = [1, 1]} : vector<1x3xf32> to vector<1x1xf32>
    %143 = vector.broadcast %142 : vector<1x1xf32> to vector<1x3xf32>
    %144 = arith.mulf %10, %143 : vector<1x3xf32>
    %145 = arith.addf %141, %144 : vector<1x3xf32>
    %146 = vector.extract_strided_slice %138 {offsets = [0, 2], sizes = [1, 1], strides = [1, 1]} : vector<1x3xf32> to vector<1x1xf32>
    %147 = vector.broadcast %146 : vector<1x1xf32> to vector<1x3xf32>
    %148 = arith.mulf %11, %147 : vector<1x3xf32>
    %149 = arith.addf %145, %148 : vector<1x3xf32>
    %150 = vector.extract_strided_slice %7 {offsets = [9, 0], sizes = [1, 3], strides = [1, 1]} : vector<16x3xf32> to vector<1x3xf32>
    %151 = arith.addf %150, %149 : vector<1x3xf32>
    %152 = math.tanh %151 : vector<1x3xf32>
    %153 = vector.extract_strided_slice %152 {offsets = [0, 0], sizes = [1, 1], strides = [1, 1]} : vector<1x3xf32> to vector<1x1xf32>
    %154 = vector.broadcast %153 : vector<1x1xf32> to vector<1x3xf32>
    %155 = arith.mulf %9, %154 : vector<1x3xf32>
    %156 = vector.extract_strided_slice %152 {offsets = [0, 1], sizes = [1, 1], strides = [1, 1]} : vector<1x3xf32> to vector<1x1xf32>
    %157 = vector.broadcast %156 : vector<1x1xf32> to vector<1x3xf32>
    %158 = arith.mulf %10, %157 : vector<1x3xf32>
    %159 = arith.addf %155, %158 : vector<1x3xf32>
    %160 = vector.extract_strided_slice %152 {offsets = [0, 2], sizes = [1, 1], strides = [1, 1]} : vector<1x3xf32> to vector<1x1xf32>
    %161 = vector.broadcast %160 : vector<1x1xf32> to vector<1x3xf32>
    %162 = arith.mulf %11, %161 : vector<1x3xf32>
    %163 = arith.addf %159, %162 : vector<1x3xf32>
    %164 = vector.extract_strided_slice %7 {offsets = [10, 0], sizes = [1, 3], strides = [1, 1]} : vector<16x3xf32> to vector<1x3xf32>
    %165 = arith.addf %164, %163 : vector<1x3xf32>
    %166 = math.tanh %165 : vector<1x3xf32>
    %167 = vector.extract_strided_slice %166 {offsets = [0, 0], sizes = [1, 1], strides = [1, 1]} : vector<1x3xf32> to vector<1x1xf32>
    %168 = vector.broadcast %167 : vector<1x1xf32> to vector<1x3xf32>
    %169 = arith.mulf %9, %168 : vector<1x3xf32>
    %170 = vector.extract_strided_slice %166 {offsets = [0, 1], sizes = [1, 1], strides = [1, 1]} : vector<1x3xf32> to vector<1x1xf32>
    %171 = vector.broadcast %170 : vector<1x1xf32> to vector<1x3xf32>
    %172 = arith.mulf %10, %171 : vector<1x3xf32>
    %173 = arith.addf %169, %172 : vector<1x3xf32>
    %174 = vector.extract_strided_slice %166 {offsets = [0, 2], sizes = [1, 1], strides = [1, 1]} : vector<1x3xf32> to vector<1x1xf32>
    %175 = vector.broadcast %174 : vector<1x1xf32> to vector<1x3xf32>
    %176 = arith.mulf %11, %175 : vector<1x3xf32>
    %177 = arith.addf %173, %176 : vector<1x3xf32>
    %178 = vector.extract_strided_slice %7 {offsets = [11, 0], sizes = [1, 3], strides = [1, 1]} : vector<16x3xf32> to vector<1x3xf32>
    %179 = arith.addf %178, %177 : vector<1x3xf32>
    %180 = math.tanh %179 : vector<1x3xf32>
    %181 = vector.extract_strided_slice %180 {offsets = [0, 0], sizes = [1, 1], strides = [1, 1]} : vector<1x3xf32> to vector<1x1xf32>
    %182 = vector.broadcast %181 : vector<1x1xf32> to vector<1x3xf32>
    %183 = arith.mulf %9, %182 : vector<1x3xf32>
    %184 = vector.extract_strided_slice %180 {offsets = [0, 1], sizes = [1, 1], strides = [1, 1]} : vector<1x3xf32> to vector<1x1xf32>
    %185 = vector.broadcast %184 : vector<1x1xf32> to vector<1x3xf32>
    %186 = arith.mulf %10, %185 : vector<1x3xf32>
    %187 = arith.addf %183, %186 : vector<1x3xf32>
    %188 = vector.extract_strided_slice %180 {offsets = [0, 2], sizes = [1, 1], strides = [1, 1]} : vector<1x3xf32> to vector<1x1xf32>
    %189 = vector.broadcast %188 : vector<1x1xf32> to vector<1x3xf32>
    %190 = arith.mulf %11, %189 : vector<1x3xf32>
    %191 = arith.addf %187, %190 : vector<1x3xf32>
    %192 = vector.extract_strided_slice %7 {offsets = [12, 0], sizes = [1, 3], strides = [1, 1]} : vector<16x3xf32> to vector<1x3xf32>
    %193 = arith.addf %192, %191 : vector<1x3xf32>
    %194 = math.tanh %193 : vector<1x3xf32>
    %195 = vector.extract_strided_slice %194 {offsets = [0, 0], sizes = [1, 1], strides = [1, 1]} : vector<1x3xf32> to vector<1x1xf32>
    %196 = vector.broadcast %195 : vector<1x1xf32> to vector<1x3xf32>
    %197 = arith.mulf %9, %196 : vector<1x3xf32>
    %198 = vector.extract_strided_slice %194 {offsets = [0, 1], sizes = [1, 1], strides = [1, 1]} : vector<1x3xf32> to vector<1x1xf32>
    %199 = vector.broadcast %198 : vector<1x1xf32> to vector<1x3xf32>
    %200 = arith.mulf %10, %199 : vector<1x3xf32>
    %201 = arith.addf %197, %200 : vector<1x3xf32>
    %202 = vector.extract_strided_slice %194 {offsets = [0, 2], sizes = [1, 1], strides = [1, 1]} : vector<1x3xf32> to vector<1x1xf32>
    %203 = vector.broadcast %202 : vector<1x1xf32> to vector<1x3xf32>
    %204 = arith.mulf %11, %203 : vector<1x3xf32>
    %205 = arith.addf %201, %204 : vector<1x3xf32>
    %206 = vector.extract_strided_slice %7 {offsets = [13, 0], sizes = [1, 3], strides = [1, 1]} : vector<16x3xf32> to vector<1x3xf32>
    %207 = arith.addf %206, %205 : vector<1x3xf32>
    %208 = math.tanh %207 : vector<1x3xf32>
    %209 = vector.extract_strided_slice %208 {offsets = [0, 0], sizes = [1, 1], strides = [1, 1]} : vector<1x3xf32> to vector<1x1xf32>
    %210 = vector.broadcast %209 : vector<1x1xf32> to vector<1x3xf32>
    %211 = arith.mulf %9, %210 : vector<1x3xf32>
    %212 = vector.extract_strided_slice %208 {offsets = [0, 1], sizes = [1, 1], strides = [1, 1]} : vector<1x3xf32> to vector<1x1xf32>
    %213 = vector.broadcast %212 : vector<1x1xf32> to vector<1x3xf32>
    %214 = arith.mulf %10, %213 : vector<1x3xf32>
    %215 = arith.addf %211, %214 : vector<1x3xf32>
    %216 = vector.extract_strided_slice %208 {offsets = [0, 2], sizes = [1, 1], strides = [1, 1]} : vector<1x3xf32> to vector<1x1xf32>
    %217 = vector.broadcast %216 : vector<1x1xf32> to vector<1x3xf32>
    %218 = arith.mulf %11, %217 : vector<1x3xf32>
    %219 = arith.addf %215, %218 : vector<1x3xf32>
    %220 = vector.extract_strided_slice %7 {offsets = [14, 0], sizes = [1, 3], strides = [1, 1]} : vector<16x3xf32> to vector<1x3xf32>
    %221 = arith.addf %220, %219 : vector<1x3xf32>
    %222 = math.tanh %221 : vector<1x3xf32>
    %223 = vector.extract_strided_slice %222 {offsets = [0, 0], sizes = [1, 1], strides = [1, 1]} : vector<1x3xf32> to vector<1x1xf32>
    %224 = vector.broadcast %223 : vector<1x1xf32> to vector<1x3xf32>
    %225 = arith.mulf %9, %224 : vector<1x3xf32>
    %226 = vector.extract_strided_slice %222 {offsets = [0, 1], sizes = [1, 1], strides = [1, 1]} : vector<1x3xf32> to vector<1x1xf32>
    %227 = vector.broadcast %226 : vector<1x1xf32> to vector<1x3xf32>
    %228 = arith.mulf %10, %227 : vector<1x3xf32>
    %229 = arith.addf %225, %228 : vector<1x3xf32>
    %230 = vector.extract_strided_slice %222 {offsets = [0, 2], sizes = [1, 1], strides = [1, 1]} : vector<1x3xf32> to vector<1x1xf32>
    %231 = vector.broadcast %230 : vector<1x1xf32> to vector<1x3xf32>
    %232 = arith.mulf %11, %231 : vector<1x3xf32>
    %233 = arith.addf %229, %232 : vector<1x3xf32>
    %234 = vector.extract_strided_slice %7 {offsets = [15, 0], sizes = [1, 3], strides = [1, 1]} : vector<16x3xf32> to vector<1x3xf32>
    %235 = arith.addf %234, %233 : vector<1x3xf32>
    %236 = math.tanh %235 : vector<1x3xf32>
    %cst_11 = arith.constant 0.000000e+00 : f32
    %237 = vector.broadcast %cst_11 : f32 to vector<1x3xf32>
    %238 = arith.maximumf %236, %237 : vector<1x3xf32>
    %c0_12 = arith.constant 0 : index
    %c0_13 = arith.constant 0 : index
    %239 = vector.load %arg5[%c0_12, %c0_13] : memref<1x3xf32, #tpu.memory_space<vmem>>, vector<1x3xf32>
    %240 = arith.mulf %238, %239 : vector<1x3xf32>
    %cst_14 = arith.constant dense<0.000000e+00> : vector<1xf32>
    %241 = vector.multi_reduction <add>, %240, %cst_14 [1] : vector<1x3xf32> to vector<1xf32>
    %242 = vector.shape_cast %241 : vector<1xf32> to vector<1x1xf32>
    %c0_15 = arith.constant 0 : index
    %c0_16 = arith.constant 0 : index
    %243 = vector.load %arg6[%c0_15, %c0_16] : memref<1x1xf32, #tpu.memory_space<vmem>>, vector<1x1xf32>
    %244 = arith.addf %242, %243 : vector<1x1xf32>
    %245 = arith.negf %244 : vector<1x1xf32>
    %246 = math.exp %245 : vector<1x1xf32>
    %cst_17 = arith.constant 1.000000e+00 : f32
    %247 = vector.broadcast %cst_17 : f32 to vector<1x1xf32>
    %248 = arith.addf %247, %246 : vector<1x1xf32>
    %249 = arith.divf %247, %248 : vector<1x1xf32>
    %c0_18 = arith.constant 0 : index
    %c0_19 = arith.constant 0 : index
    %250 = vector.load %arg7[%c0_18, %c0_19] : memref<1x1xf32, #tpu.memory_space<vmem>>, vector<1x1xf32>
    tpu.vector_store %arg7[%c0_18, %c0_19], %249 {strides = array<i32>} : memref<1x1xf32, #tpu.memory_space<vmem>>, vector<1x1xf32>,
    return
  }
}

</mosaic_0001>

<llo_original>
// kernel: tpu_custom_call.1
$region0: #{tpu_custom_call.1}
  #allocation0 [shape = 'u32[]', space=smem, size = 0x4, offset = 0x4, fixed_abs, tag = 'smem constant byte address 0x4 - core index']
  #allocation1 [shape = 'u32[144,128]{1,0:T(1,128)}', space=vmem, size = 0x12000, scoped, tag = 'internal scratch']
  #allocation2 [shape = 'f32[1,1]{1,0:T(1,128)S(1)}', space=vmem, size = 0x200, scoped, tag = 'scoped memory for tpu_custom_call.1']
  %s0 = inlined_call_operand.vmem [shape: f32[16,16], index: 0, kind: input, shape index: {}]
  %s1 = inlined_call_operand.vmem [shape: f32[16,2], index: 1, kind: input, shape index: {}]
  %s2 = inlined_call_operand.vmem [shape: f32[2,3], index: 2, kind: input, shape index: {}]
  %s3 = inlined_call_operand.vmem [shape: f32[1,3], index: 3, kind: input, shape index: {}]
  %s4 = inlined_call_operand.vmem [shape: f32[3,3], index: 4, kind: input, shape index: {}]
  %s5 = inlined_call_operand.vmem [shape: f32[1,3], index: 5, kind: input, shape index: {}]
  %s6 = inlined_call_operand.<no memory space> [shape: f32[1,1], index: 6, kind: input, shape index: {}]
  %s7 = inlined_call_operand.hbm [shape: f32[1,1], index: 7, kind: output, shape index: {}]
  %s8 = sld [smem:[#allocation0]]
  $region38: #{tpu_custom_call.1} parent=0
    _
  %s10 = ssub.s32 1, %s8
  %s11 = scalar_select 0, %s10, %s8
  %v12 = vstv %s6
  %13 = vst [vmem:[#allocation2] sm:$0x1] %v12
  $region1: #{tpu_custom_call.1} parent=0
    #allocation3 [shape = 'u8[512]{0}', space=vmem, size = 0x400, scoped, tag = 'output window, operand 0, single buffered']
    #allocation4 [shape = 's32[1]{0}', space=sflag, size = 0x4, scoped, tag = 'scoped memory for tpu_custom_call.1']
    %14 = vsyncpa [#allocation4], 0
    // Predicated region
    $region2: #{tpu_custom_call.1} parent=1 // pred_check
      _
    $region3: #{tpu_custom_call.1} parent=1 // pred_check_branch
      %16 = sbr.rel (0) target = $region5
    $region4: #{tpu_custom_call.1} parent=1 // pred_region
      _
    $region5: #{tpu_custom_call.1} parent=1 // pred_fallthru
      _
    // Predicated region
    $region6: #{tpu_custom_call.1} parent=1 // pred_check
      _
    $region7: #{tpu_custom_call.1} parent=1 // pred_check_branch
      %18 = sbr.rel (0) target = $region9
    $region8: #{tpu_custom_call.1} parent=1 // pred_region
      _
    $region9: #{tpu_custom_call.1} parent=1 // pred_fallthru
      _
    // Predicated region
    $region10: #{tpu_custom_call.1} parent=1 // pred_check
      _
    $region11: #{tpu_custom_call.1} parent=1 // pred_check_branch
      %20 = sbr.rel (0) target = $region13
    $region12: #{tpu_custom_call.1} parent=1 // pred_region
      _
    $region13: #{tpu_custom_call.1} parent=1 // pred_fallthru
      _
    // Predicated region
    $region14: #{tpu_custom_call.1} parent=1 // pred_check
      _
    $region15: #{tpu_custom_call.1} parent=1 // pred_check_branch
      %22 = sbr.rel (0) target = $region17
    $region16: #{tpu_custom_call.1} parent=1 // pred_region
      _
    $region17: #{tpu_custom_call.1} parent=1 // pred_fallthru
      _
    // Predicated region
    $region18: #{tpu_custom_call.1} parent=1 // pred_check
      _
    $region19: #{tpu_custom_call.1} parent=1 // pred_check_branch
      %24 = sbr.rel (0) target = $region21
    $region20: #{tpu_custom_call.1} parent=1 // pred_region
      _
    $region21: #{tpu_custom_call.1} parent=1 // pred_fallthru
      _
    // Predicated region
    $region22: #{tpu_custom_call.1} parent=1 // pred_check
      _
    $region23: #{tpu_custom_call.1} parent=1 // pred_check_branch
      %26 = sbr.rel (0) target = $region25
    $region24: #{tpu_custom_call.1} parent=1 // pred_region
      _
    $region25: #{tpu_custom_call.1} parent=1 // pred_fallthru
      _
    // Predicated region
    $region26: #{tpu_custom_call.1} parent=1 // pred_check
      _
    $region27: #{tpu_custom_call.1} parent=1 // pred_check_branch
      %28 = sbr.rel (0) target = $region29
    $region28: #{tpu_custom_call.1} parent=1 // pred_region
      _
    $region29: #{tpu_custom_call.1} parent=1 // pred_fallthru
      _
    %v29 = vld [vmem:[%s1] sm:$0xff]
    %v30 = vld [vmem:[%s1 + $0x8] sm:$0xff]
    %v31 = vld [vmem:[%s2] sm:$0x3]
    %vm32 = vcmask 15360
    %v34 = vsel %vm32, %v29, 0
    %v37 = vsel %vm32, %v30, 0
    %vm39 = vcmask 1041408
    %v41 = vsel %vm39, %v31, 0
    %43 = vmatprep.subr.mxu0 0.0
    %44 = vmatpush1.msra.mxu0 0.0
    %45 = vmatprep.subr.mxu0 0.0
    %46 = vmatpush1.msra.mxu0 0.0
    %47 = vmatprep.subr.mxu0 0.0
    %48 = vmatpush1.msra.mxu0 0.0
    %49 = vmatprep.subr.mxu0 0.0
    %50 = vmatpush1.msra.mxu0 0.0
    %51 = vmatprep.subr.mxu0 0.0
    %52 = vmatpush1.msra.mxu0 0.0
    %53 = vmatprep.subr.mxu0 0.0
    %54 = vmatpush1.msra.mxu0 0.0
    %55 = vmatprep.subr.mxu0 0.0
    %56 = vmatpush1.msra.mxu0 0.0
    %57 = vmatprep.subr.mxu0 0.0
    %58 = vmatpush1.msra.mxu0 0.0
    %59 = vmatprep.subr.mxu0 0.0
    %60 = vmatpush1.msra.mxu0 0.0
    %61 = vmatprep.subr.mxu0 0.0
    %62 = vmatpush1.msra.mxu0 0.0
    %63 = vmatprep.subr.mxu0 0.0
    %64 = vmatpush1.msra.mxu0 0.0
    %65 = vmatprep.subr.mxu0 0.0
    %66 = vmatpush1.msra.mxu0 0.0
    %67 = vmatprep.subr.mxu0 0.0
    %68 = vmatpush1.msra.mxu0 0.0
    %69 = vmatprep.subr.mxu0 0.0
    %70 = vmatpush1.msra.mxu0 0.0
    %71 = vmatprep.subr.mxu0 0.0
    %72 = vmatpush1.msra.mxu0 0.0
    %73 = vmatprep.subr.mxu0 0.0
    %74 = vmatpush1.msra.mxu0 %v41
    %75 = vmatprep.subr.mxu0 0.0
    %76 = vmatpush2.msra.mxu0 0.0
    %77 = vmatprep.subr.mxu0 0.0
    %78 = vmatpush2.msra.mxu0 0.0
    %79 = vmatprep.subr.mxu0 0.0
    %80 = vmatpush2.msra.mxu0 0.0
    %81 = vmatprep.subr.mxu0 0.0
    %82 = vmatpush2.msra.mxu0 0.0
    %83 = vmatprep.subr.mxu0 0.0
    %84 = vmatpush2.msra.mxu0 0.0
    %85 = vmatprep.subr.mxu0 0.0
    %86 = vmatpush2.msra.mxu0 0.0
    %87 = vmatprep.subr.mxu0 0.0
    %88 = vmatpush2.msra.mxu0 0.0
    %89 = vmatprep.subr.mxu0 0.0
    %90 = vmatpush2.msra.mxu0 0.0
    %91 = vmatprep.subr.mxu0 0.0
    %92 = vmatpush2.msra.mxu0 0.0
    %93 = vmatprep.subr.mxu0 0.0
    %94 = vmatpush2.msra.mxu0 0.0
    %95 = vmatprep.subr.mxu0 0.0
    %96 = vmatpush2.msra.mxu0 0.0
    %97 = vmatprep.subr.mxu0 0.0
    %98 = vmatpush2.msra.mxu0 0.0
    %99 = vmatprep.subr.mxu0 0.0
    %100 = vmatpush2.msra.mxu0 0.0
    %101 = vmatprep.subr.mxu0 0.0
    %102 = vmatpush2.msra.mxu0 0.0
    %103 = vmatprep.subr.mxu0 0.0
    %104 = vmatpush2.msra.mxu0 0.0
    %105 = vmatprep.subr.mxu0 0.0
    %106 = vmatpush2.msra.mxu0 0.0
    %107 = vmatprep.mubr.f32.mxu0 0.0
    %108 = vmatmul.mubr.f32.gmra.mxu0 %v34
    %v109 = vpop.f32.mrf.mxu0
    %v110 = vadd.f32 0.0, %v109
    %v111 = vpop.f32.mrf.mxu0
    %112 = vmatprep.mubr.f32.mxu0 0.0
    %113 = vmatmul.mubr.f32.gmra.mxu0 %v37
    %v114 = vpop.f32.mrf.mxu0
    %v115 = vadd.f32 0.0, %v114
    %v116 = vpop.f32.mrf.mxu0
    %117 = vdwg.mxu0
    %v118 = vld [vmem:[%s0] sm:$0xff]
    %v119 = vld [vmem:[%s0 + $0x8] sm:$0xff]
    %v120 = vld [vmem:[%s3] sm:$0x1]
    %v122 = vlaneseq
    %v123 = vshrl.u32 %v122, 7
    %v124 = vsub.s32 0, %v123
    %v125 = vrot.slane %v120, %v124
    %vm127 = vcmask 130048
    %v129 = vsel %vm127, %v118, 0
    %v132 = vsel %vm127, %v119, 0
    %134 = vmatprep.subr.mxu0 0.0
    %135 = vmatpush1.msra.mxu0 0.0
    %136 = vmatprep.subr.mxu0 0.0
    %137 = vmatpush1.msra.mxu0 0.0
    %138 = vmatprep.subr.mxu0 0.0
    %139 = vmatpush1.msra.mxu0 0.0
    %140 = vmatprep.subr.mxu0 0.0
    %141 = vmatpush1.msra.mxu0 0.0
    %142 = vmatprep.subr.mxu0 0.0
    %143 = vmatpush1.msra.mxu0 0.0
    %144 = vmatprep.subr.mxu0 0.0
    %145 = vmatpush1.msra.mxu0 0.0
    %146 = vmatprep.subr.mxu0 0.0
    %147 = vmatpush1.msra.mxu0 0.0
    %148 = vmatprep.subr.mxu0 0.0
    %149 = vmatpush1.msra.mxu0 0.0
    %150 = vmatprep.subr.mxu0 0.0
    %151 = vmatpush1.msra.mxu0 0.0
    %152 = vmatprep.subr.mxu0 0.0
    %153 = vmatpush1.msra.mxu0 0.0
    %154 = vmatprep.subr.mxu0 0.0
    %155 = vmatpush1.msra.mxu0 0.0
    %156 = vmatprep.subr.mxu0 0.0
    %157 = vmatpush1.msra.mxu0 0.0
    %158 = vmatprep.subr.mxu0 0.0
    %159 = vmatpush1.msra.mxu0 0.0
    %160 = vmatprep.subr.mxu0 0.0
    %161 = vmatpush1.msra.mxu0 0.0
    %162 = vmatprep.subr.mxu0 0.0
    %163 = vmatpush1.msra.mxu0 %v115
    %164 = vmatprep.subr.mxu0 0.0
    %165 = vmatpush1.msra.mxu0 %v110
    %166 = vmatprep.subr.mxu0 0.0
    %167 = vmatpush2.msra.mxu0 0.0
    %168 = vmatprep.subr.mxu0 0.0
    %169 = vmatpush2.msra.mxu0 0.0
    %170 = vmatprep.subr.mxu0 0.0
    %171 = vmatpush2.msra.mxu0 0.0
    %172 = vmatprep.subr.mxu0 0.0
    %173 = vmatpush2.msra.mxu0 0.0
    %174 = vmatprep.subr.mxu0 0.0
    %175 = vmatpush2.msra.mxu0 0.0
    %176 = vmatprep.subr.mxu0 0.0
    %177 = vmatpush2.msra.mxu0 0.0
    %178 = vmatprep.subr.mxu0 0.0
    %179 = vmatpush2.msra.mxu0 0.0
    %180 = vmatprep.subr.mxu0 0.0
    %181 = vmatpush2.msra.mxu0 0.0
    %182 = vmatprep.subr.mxu0 0.0
    %183 = vmatpush2.msra.mxu0 0.0
    %184 = vmatprep.subr.mxu0 0.0
    %185 = vmatpush2.msra.mxu0 0.0
    %186 = vmatprep.subr.mxu0 0.0
    %187 = vmatpush2.msra.mxu0 0.0
    %188 = vmatprep.subr.mxu0 0.0
    %189 = vmatpush2.msra.mxu0 0.0
    %190 = vmatprep.subr.mxu0 0.0
    %191 = vmatpush2.msra.mxu0 0.0
    %192 = vmatprep.subr.mxu0 0.0
    %193 = vmatpush2.msra.mxu0 0.0
    %194 = vmatprep.subr.mxu0 0.0
    %195 = vmatpush2.msra.mxu0 0.0
    %196 = vmatprep.subr.mxu0 0.0
    %197 = vmatpush2.msra.mxu0 0.0
    %198 = vmatprep.mubr.f32.mxu0 0.0
    %199 = vmatmul.mubr.f32.gmra.mxu0 %v129
    %v200 = vpop.f32.mrf.mxu0
    %v201 = vadd.f32 %v125, %v200
    %v202 = vpop.f32.mrf.mxu0
    %203 = vmatprep.mubr.f32.mxu0 0.0
    %204 = vmatmul.mubr.f32.gmra.mxu0 %v132
    %v205 = vpop.f32.mrf.mxu0
    %v206 = vadd.f32 %v125, %v205
    %v207 = vpop.f32.mrf.mxu0
    %208 = vdwg.mxu0
    %v209 = vld [vmem:[%s4] sm:$0x7]
    %v210 = vmul.f32 %v209, 0.0
    %v212 = vrot.slane %v210, 1
    %v214 = vadd.f32 %v210, %v212
    %v215 = vrot.slane %v210, 2
    %v217 = vadd.f32 %v214, %v215
    %v218 = vadd.f32 %v201, %v217
    %v219 = vtanh.pop %v218
    %221 = vset.pattern.permute.xlu0 0
    %222 = vperm.xlu0 %221, %v219
    %v223 = vpop.permute.xlu0 %222
    %v225 = vmul.f32 %v209, %v223
    %226 = vset.pattern.permute.xlu0 1
    %227 = vperm.xlu0 %226, %v219
    %v228 = vpop.permute.xlu0 %227
    %v229 = vrot.slane %v228, 7
    %v231 = vmul.f32 %v209, %v229
    %v233 = vrot.slane %v231, 1
    %v235 = vadd.f32 %v225, %v233
    %236 = vset.pattern.permute.xlu0 2
    %237 = vperm.xlu0 %236, %v219
    %v238 = vpop.permute.xlu0 %237
    %v239 = vrot.slane %v238, 6
    %v241 = vmul.f32 %v209, %v239
    %v243 = vrot.slane %v241, 2
    %v245 = vadd.f32 %v235, %v243
    %v247 = vrot.slane %v245, 7
    %v249 = vadd.f32 %v201, %v247
    %v250 = vtanh.pop %v249
    %252 = vset.pattern.permute.xlu0 0
    %253 = vperm.xlu0 %252, %v250
    %v254 = vpop.permute.xlu0 %253
    %v255 = vrot.slane %v254, 1
    %v257 = vmul.f32 %v209, %v255
    %258 = vset.pattern.permute.xlu0 1
    %259 = vperm.xlu0 %258, %v250
    %v260 = vpop.permute.xlu0 %259
    %v262 = vmul.f32 %v209, %v260
    %v264 = vrot.slane %v262, 1
    %v266 = vadd.f32 %v257, %v264
    %267 = vset.pattern.permute.xlu0 2
    %268 = vperm.xlu0 %267, %v250
    %v269 = vpop.permute.xlu0 %268
    %v270 = vrot.slane %v269, 7
    %v272 = vmul.f32 %v209, %v270
    %v274 = vrot.slane %v272, 2
    %v276 = vadd.f32 %v266, %v274
    %v278 = vrot.slane %v276, 6
    %v280 = vadd.f32 %v201, %v278
    %v281 = vtanh.pop %v280
    %283 = vset.pattern.permute.xlu0 0
    %284 = vperm.xlu0 %283, %v281
    %v285 = vpop.permute.xlu0 %284
    %v286 = vrot.slane %v285, 2
    %v288 = vmul.f32 %v209, %v286
    %289 = vset.pattern.permute.xlu0 1
    %290 = vperm.xlu0 %289, %v281
    %v291 = vpop.permute.xlu0 %290
    %v292 = vrot.slane %v291, 1
    %v294 = vmul.f32 %v209, %v292
    %v296 = vrot.slane %v294, 1
    %v298 = vadd.f32 %v288, %v296
    %299 = vset.pattern.permute.xlu0 2
    %300 = vperm.xlu0 %299, %v281
    %v301 = vpop.permute.xlu0 %300
    %v303 = vmul.f32 %v209, %v301
    %v305 = vrot.slane %v303, 2
    %v307 = vadd.f32 %v298, %v305
    %v309 = vrot.slane %v307, 5
    %v311 = vadd.f32 %v201, %v309
    %v312 = vtanh.pop %v311
    %314 = vset.pattern.permute.xlu0 0
    %315 = vperm.xlu0 %314, %v312
    %v316 = vpop.permute.xlu0 %315
    %v317 = vrot.slane %v316, 3
    %v319 = vmul.f32 %v209, %v317
    %320 = vset.pattern.permute.xlu0 1
    %321 = vperm.xlu0 %320, %v312
    %v322 = vpop.permute.xlu0 %321
    %v323 = vrot.slane %v322, 2
    %v325 = vmul.f32 %v209, %v323
    %v327 = vrot.slane %v325, 1
    %v329 = vadd.f32 %v319, %v327
    %330 = vset.pattern.permute.xlu0 2
    %331 = vperm.xlu0 %330, %v312
    %v332 = vpop.permute.xlu0 %331
    %v333 = vrot.slane %v332, 1
    %v335 = vmul.f32 %v209, %v333
    %v337 = vrot.slane %v335, 2
    %v339 = vadd.f32 %v329, %v337
    %v341 = vrot.slane %v339, 4
    %v343 = vadd.f32 %v201, %v341
    %v344 = vtanh.pop %v343
    %346 = vset.pattern.permute.xlu0 0
    %347 = vperm.xlu0 %346, %v344
    %v348 = vpop.permute.xlu0 %347
    %v349 = vrot.slane %v348, 4
    %v351 = vmul.f32 %v209, %v349
    %352 = vset.pattern.permute.xlu0 1
    %353 = vperm.xlu0 %352, %v344
    %v354 = vpop.permute.xlu0 %353
    %v355 = vrot.slane %v354, 3
    %v357 = vmul.f32 %v209, %v355
    %v359 = vrot.slane %v357, 1
    %v361 = vadd.f32 %v351, %v359
    %362 = vset.pattern.permute.xlu0 2
    %363 = vperm.xlu0 %362, %v344
    %v364 = vpop.permute.xlu0 %363
    %v365 = vrot.slane %v364, 2
    %v367 = vmul.f32 %v209, %v365
    %v369 = vrot.slane %v367, 2
    %v371 = vadd.f32 %v361, %v369
    %v373 = vrot.slane %v371, 3
    %v375 = vadd.f32 %v201, %v373
    %v376 = vtanh.pop %v375
    %378 = vset.pattern.permute.xlu0 0
    %379 = vperm.xlu0 %378, %v376
    %v380 = vpop.permute.xlu0 %379
    %v381 = vrot.slane %v380, 5
    %v383 = vmul.f32 %v209, %v381
    %384 = vset.pattern.permute.xlu0 1
    %385 = vperm.xlu0 %384, %v376
    %v386 = vpop.permute.xlu0 %385
    %v387 = vrot.slane %v386, 4
    %v389 = vmul.f32 %v209, %v387
    %v391 = vrot.slane %v389, 1
    %v393 = vadd.f32 %v383, %v391
    %394 = vset.pattern.permute.xlu0 2
    %395 = vperm.xlu0 %394, %v376
    %v396 = vpop.permute.xlu0 %395
    %v397 = vrot.slane %v396, 3
    %v399 = vmul.f32 %v209, %v397
    %v401 = vrot.slane %v399, 2
    %v403 = vadd.f32 %v393, %v401
    %v405 = vrot.slane %v403, 2
    %v407 = vadd.f32 %v201, %v405
    %v408 = vtanh.pop %v407
    %410 = vset.pattern.permute.xlu0 0
    %411 = vperm.xlu0 %410, %v408
    %v412 = vpop.permute.xlu0 %411
    %v413 = vrot.slane %v412, 6
    %v415 = vmul.f32 %v209, %v413
    %416 = vset.pattern.permute.xlu0 1
    %417 = vperm.xlu0 %416, %v408
    %v418 = vpop.permute.xlu0 %417
    %v419 = vrot.slane %v418, 5
    %v421 = vmul.f32 %v209, %v419
    %v423 = vrot.slane %v421, 1
    %v425 = vadd.f32 %v415, %v423
    %426 = vset.pattern.permute.xlu0 2
    %427 = vperm.xlu0 %426, %v408
    %v428 = vpop.permute.xlu0 %427
    %v429 = vrot.slane %v428, 4
    %v431 = vmul.f32 %v209, %v429
    %v433 = vrot.slane %v431, 2
    %v435 = vadd.f32 %v425, %v433
    %v437 = vrot.slane %v435, 1
    %v439 = vadd.f32 %v201, %v437
    %v440 = vtanh.pop %v439
    %442 = vset.pattern.permute.xlu0 0
    %443 = vperm.xlu0 %442, %v440
    %v444 = vpop.permute.xlu0 %443
    %v445 = vrot.slane %v444, 7
    %v447 = vmul.f32 %v209, %v445
    %448 = vset.pattern.permute.xlu0 1
    %449 = vperm.xlu0 %448, %v440
    %v450 = vpop.permute.xlu0 %449
    %v451 = vrot.slane %v450, 6
    %v453 = vmul.f32 %v209, %v451
    %v455 = vrot.slane %v453, 1
    %v457 = vadd.f32 %v447, %v455
    %458 = vset.pattern.permute.xlu0 2
    %459 = vperm.xlu0 %458, %v440
    %v460 = vpop.permute.xlu0 %459
    %v461 = vrot.slane %v460, 5
    %v463 = vmul.f32 %v209, %v461
    %v465 = vrot.slane %v463, 2
    %v467 = vadd.f32 %v457, %v465
    %v468 = vadd.f32 %v206, %v467
    %v469 = vtanh.pop %v468
    %471 = vset.pattern.permute.xlu0 0
    %472 = vperm.xlu0 %471, %v469
    %v473 = vpop.permute.xlu0 %472
    %v475 = vmul.f32 %v209, %v473
    %476 = vset.pattern.permute.xlu0 1
    %477 = vperm.xlu0 %476, %v469
    %v478 = vpop.permute.xlu0 %477
    %v479 = vrot.slane %v478, 7
    %v481 = vmul.f32 %v209, %v479
    %v483 = vrot.slane %v481, 1
    %v485 = vadd.f32 %v475, %v483
    %486 = vset.pattern.permute.xlu0 2
    %487 = vperm.xlu0 %486, %v469
    %v488 = vpop.permute.xlu0 %487
    %v489 = vrot.slane %v488, 6
    %v491 = vmul.f32 %v209, %v489
    %v493 = vrot.slane %v491, 2
    %v495 = vadd.f32 %v485, %v493
    %v497 = vrot.slane %v495, 7
    %v499 = vadd.f32 %v206, %v497
    %v500 = vtanh.pop %v499
    %502 = vset.pattern.permute.xlu0 0
    %503 = vperm.xlu0 %502, %v500
    %v504 = vpop.permute.xlu0 %503
    %v505 = vrot.slane %v504, 1
    %v507 = vmul.f32 %v209, %v505
    %508 = vset.pattern.permute.xlu0 1
    %509 = vperm.xlu0 %508, %v500
    %v510 = vpop.permute.xlu0 %509
    %v512 = vmul.f32 %v209, %v510
    %v514 = vrot.slane %v512, 1
    %v516 = vadd.f32 %v507, %v514
    %517 = vset.pattern.permute.xlu0 2
    %518 = vperm.xlu0 %517, %v500
    %v519 = vpop.permute.xlu0 %518
    %v520 = vrot.slane %v519, 7
    %v522 = vmul.f32 %v209, %v520
    %v524 = vrot.slane %v522, 2
    %v526 = vadd.f32 %v516, %v524
    %v528 = vrot.slane %v526, 6
    %v530 = vadd.f32 %v206, %v528
    %v531 = vtanh.pop %v530
    %533 = vset.pattern.permute.xlu0 0
    %534 = vperm.xlu0 %533, %v531
    %v535 = vpop.permute.xlu0 %534
    %v536 = vrot.slane %v535, 2
    %v538 = vmul.f32 %v209, %v536
    %539 = vset.pattern.permute.xlu0 1
    %540 = vperm.xlu0 %539, %v531
    %v541 = vpop.permute.xlu0 %540
    %v542 = vrot.slane %v541, 1
    %v544 = vmul.f32 %v209, %v542
    %v546 = vrot.slane %v544, 1
    %v548 = vadd.f32 %v538, %v546
    %549 = vset.pattern.permute.xlu0 2
    %550 = vperm.xlu0 %549, %v531
    %v551 = vpop.permute.xlu0 %550
    %v553 = vmul.f32 %v209, %v551
    %v555 = vrot.slane %v553, 2
    %v557 = vadd.f32 %v548, %v555
    %v559 = vrot.slane %v557, 5
    %v561 = vadd.f32 %v206, %v559
    %v562 = vtanh.pop %v561
    %564 = vset.pattern.permute.xlu0 0
    %565 = vperm.xlu0 %564, %v562
    %v566 = vpop.permute.xlu0 %565
    %v567 = vrot.slane %v566, 3
    %v569 = vmul.f32 %v209, %v567
    %570 = vset.pattern.permute.xlu0 1
    %571 = vperm.xlu0 %570, %v562
    %v572 = vpop.permute.xlu0 %571
    %v573 = vrot.slane %v572, 2
    %v575 = vmul.f32 %v209, %v573
    %v577 = vrot.slane %v575, 1
    %v579 = vadd.f32 %v569, %v577
    %580 = vset.pattern.permute.xlu0 2
    %581 = vperm.xlu0 %580, %v562
    %v582 = vpop.permute.xlu0 %581
    %v583 = vrot.slane %v582, 1
    %v585 = vmul.f32 %v209, %v583
    %v587 = vrot.slane %v585, 2
    %v589 = vadd.f32 %v579, %v587
    %v591 = vrot.slane %v589, 4
    %v593 = vadd.f32 %v206, %v591
    %v594 = vtanh.pop %v593
    %596 = vset.pattern.permute.xlu0 0
    %597 = vperm.xlu0 %596, %v594
    %v598 = vpop.permute.xlu0 %597
    %v599 = vrot.slane %v598, 4
    %v601 = vmul.f32 %v209, %v599
    %602 = vset.pattern.permute.xlu0 1
    %603 = vperm.xlu0 %602, %v594
    %v604 = vpop.permute.xlu0 %603
    %v605 = vrot.slane %v604, 3
    %v607 = vmul.f32 %v209, %v605
    %v609 = vrot.slane %v607, 1
    %v611 = vadd.f32 %v601, %v609
    %612 = vset.pattern.permute.xlu0 2
    %613 = vperm.xlu0 %612, %v594
    %v614 = vpop.permute.xlu0 %613
    %v615 = vrot.slane %v614, 2
    %v617 = vmul.f32 %v209, %v615
    %v619 = vrot.slane %v617, 2
    %v621 = vadd.f32 %v611, %v619
    %v623 = vrot.slane %v621, 3
    %v625 = vadd.f32 %v206, %v623
    %v626 = vtanh.pop %v625
    %628 = vset.pattern.permute.xlu0 0
    %629 = vperm.xlu0 %628, %v626
    %v630 = vpop.permute.xlu0 %629
    %v631 = vrot.slane %v630, 5
    %v633 = vmul.f32 %v209, %v631
    %634 = vset.pattern.permute.xlu0 1
    %635 = vperm.xlu0 %634, %v626
    %v636 = vpop.permute.xlu0 %635
    %v637 = vrot.slane %v636, 4
    %v639 = vmul.f32 %v209, %v637
    %v641 = vrot.slane %v639, 1
    %v643 = vadd.f32 %v633, %v641
    %644 = vset.pattern.permute.xlu0 2
    %645 = vperm.xlu0 %644, %v626
    %v646 = vpop.permute.xlu0 %645
    %v647 = vrot.slane %v646, 3
    %v649 = vmul.f32 %v209, %v647
    %v651 = vrot.slane %v649, 2
    %v653 = vadd.f32 %v643, %v651
    %v655 = vrot.slane %v653, 2
    %v657 = vadd.f32 %v206, %v655
    %v658 = vtanh.pop %v657
    %660 = vset.pattern.permute.xlu0 0
    %661 = vperm.xlu0 %660, %v658
    %v662 = vpop.permute.xlu0 %661
    %v663 = vrot.slane %v662, 6
    %v665 = vmul.f32 %v209, %v663
    %666 = vset.pattern.permute.xlu0 1
    %667 = vperm.xlu0 %666, %v658
    %v668 = vpop.permute.xlu0 %667
    %v669 = vrot.slane %v668, 5
    %v671 = vmul.f32 %v209, %v669
    %v673 = vrot.slane %v671, 1
    %v675 = vadd.f32 %v665, %v673
    %676 = vset.pattern.permute.xlu0 2
    %677 = vperm.xlu0 %676, %v658
    %v678 = vpop.permute.xlu0 %677
    %v679 = vrot.slane %v678, 4
    %v681 = vmul.f32 %v209, %v679
    %v683 = vrot.slane %v681, 2
    %v685 = vadd.f32 %v675, %v683
    %v687 = vrot.slane %v685, 1
    %v689 = vadd.f32 %v206, %v687
    %v690 = vtanh.pop %v689
    %v691 = vmax.f32 %v690, 0.0
    %v692 = vld [vmem:[%s5] sm:$0x1]
    %v694 = vlaneseq
    %v695 = vshrl.u32 %v694, 7
    %v696 = vsub.s32 0, %v695
    %v697 = vrot.slane %v692, %v696
    %v699 = vmul.f32 %v691, %v697
    %vm700 = vcmask 23559
    %v701 = vsel %vm700, %v699, 0.0
    %702 = vadd.xlane.f32.xlu0 %v701
    %v703 = vpop.xlane.xlu0 %702
    %v704 = vld [vmem:[#allocation2] sm:$0x1]
    %v706 = vlaneseq
    %v707 = vshrl.u32 %v706, 7
    %v708 = vsub.s32 0, %v707
    %v709 = vrot.slane %v704, %v708
    %v711 = vadd.f32 %v703, %v709
    %v712 = vxor.u32 %v711, 2147483648
    %v713 = vmul.f32 %v712, 1.442695
    %v714 = vpow.pop %v713
    %v715 = vadd.f32 %v714, 1.0
    %v716 = vrcp.pop %v715
    %v717 = vmul.f32 1.0, %v716
    %vm718 = vcmask 7175
    %719 = vst.msk [vmem:[#allocation3 - $0x7] sm:$0x80] %vm718, %v717
    // Predicated region
    $region30: #{tpu_custom_call.1} parent=1 // pred_check
      _
    $region31: #{tpu_custom_call.1} parent=1 // pred_check_branch
      %721 = sbr.rel (0) target = $region33
    $region32: #{tpu_custom_call.1} parent=1 // pred_region
      %s723 = ssub.s32 16, 16
      %724 = vsyncadd [#allocation4], %s723
      %s726 = sshll.u32 [#allocation3], 4
      %s727 = int_to_ptr.vmem [resolvable:$true] %s726
      %729 = dma.vmem_to_hbm [thread:$0]  %s727, 16, %s7, [#allocation4]
    $region33: #{tpu_custom_call.1} parent=1 // pred_fallthru
      _
    // Predicated region
    $region34: #{tpu_custom_call.1} parent=1 // pred_check
      _
    $region35: #{tpu_custom_call.1} parent=1 // pred_check_branch
      %731 = sbr.rel (0) target = $region37
    $region36: #{tpu_custom_call.1} parent=1 // pred_region
      %732 = dma.done [#allocation4], 16
    $region37: #{tpu_custom_call.1} parent=1 // pred_fallthru
      _
    %733 = vsyncpa [#allocation4], 1

</llo_original>
